<compile_context>
chip_gen: v5e
topology: v5e:2x2
jax: 0.10.0
libtpu: 0.0.40
codegen_flags: <defaults>
</compile_context>

<pallas_src>
import functools

import jax
import jax.numpy as jnp
from jax.experimental import pallas as pl
from jax.experimental.pallas import tpu as pltpu


def _round_up(x, m):
    return ((x + m - 1) // m) * m


def _cdiv(a, b):
    return (a + b - 1) // b


def _mlp_kernel(x_ref, w1_ref, b1_ref, w2_ref, b2_ref, o_ref, *, multilabel):
    # Fused layer1 -> ReLU -> layer2 (-> sigmoid), all operands resident in VMEM.
    # x arrives unpadded f32 and is cast to bf16 on-chip for the MXU; accumulation
    # and elementwise math stay f32 (v5e VPU/EUP have no bf16 datapath).
    x = x_ref[...].astype(jnp.bfloat16)                                # [TB, E]

    # layer1: x @ W1 (MXU, bf16 operands, f32 accumulate) + b1, then ReLU (VPU)
    h = jnp.dot(x, w1_ref[...], preferred_element_type=jnp.float32)    # [TB, Hp] f32
    h = jnp.maximum(h + b1_ref[...], 0.0)

    # layer2: ReLU(h) @ W2 + b2  (recast h to bf16 only for the MXU)
    y = jnp.dot(h.astype(jnp.bfloat16), w2_ref[...],
                preferred_element_type=jnp.float32)                    # [TB, Lp] f32
    y = y + b2_ref[...]

    if multilabel:
        # exp + approx reciprocal both land on the EUP (free slot in a mem-bound
        # kernel); f32 exp overflow for very negative y gives inf -> 1/inf -> 0,
        # the correct sigmoid limit, so no abs/where needed.
        y = pl.reciprocal(1.0 + jnp.exp(-y), approx=True)

    o_ref[...] = y.astype(o_ref.dtype)


def prepare_params(w1, b1, w2, b2):
    """Pad H/L to 128-lane multiples and cast weights to bf16 ONCE (init time).

    w1: [E, H] (= layer1.weight.T), b1: [H]
    w2: [H, L] (= layer2.weight.T), b2: [L]
    """
    E, H = w1.shape
    H2, L = w2.shape
    assert H == H2, "layer1 output dim must match layer2 input dim"

    Hp = _round_up(H, 128)
    Lp = _round_up(L, 128)
    # Note: on v6e/v7x a 256-multiple for Hp/Lp feeds the 256-wide MXU better,
    # but it doubles weight bytes for H in [129, 256] and this kernel is
    # HBM-bound at small/medium sizes, so we keep 128-lane padding.

    w1_p = jnp.zeros((E, Hp), jnp.bfloat16).at[:, :H].set(
        jnp.asarray(w1, jnp.float32).astype(jnp.bfloat16))
    w2_p = jnp.zeros((Hp, Lp), jnp.bfloat16).at[:H, :L].set(
        jnp.asarray(w2, jnp.float32).astype(jnp.bfloat16))
    b1_p = jnp.zeros((1, Hp), jnp.float32).at[0, :H].set(jnp.asarray(b1, jnp.float32))
    b2_p = jnp.zeros((1, Lp), jnp.float32).at[0, :L].set(jnp.asarray(b2, jnp.float32))

    # Zero padding keeps semantics exact: padded hidden columns get 0 weight and
    # 0 bias -> ReLU(0)=0 -> contribute nothing; padded label lanes are sliced off.
    return {"w1": w1_p, "b1": b1_p, "w2": w2_p, "b2": b2_p, "label_dim": L}


@functools.partial(jax.jit, static_argnames=("multilabel", "label_dim", "batch_tile"))
def _forward(x, w1_p, b1_p, w2_p, b2_p, *, multilabel, label_dim, batch_tile):
    B, E = x.shape
    Ew, Hp = w1_p.shape
    Hp2, Lp = w2_p.shape
    assert E == Ew and Hp == Hp2, "parameter shapes do not match the input"

    # Batch tiling: multiples of 16 (bf16 sublane packing); ensure >=2 grid steps
    # whenever B allows so ("parallel",) can shard across both v7x TensorCores.
    if B <= 16:
        TB = 16
    else:
        TB = max(16, min(_round_up(batch_tile, 16), _round_up(_cdiv(B, 2), 16)))
    num_tiles = _cdiv(B, TB)
    Bo = num_tiles * TB          # padded output rows; rows >= B are sliced off below

    # Honest VMEM budget: Pallas double-buffers every operand by default (weights
    # included even though their block index is constant), plus f32 intermediates.
    vmem_need = (
        2 * (TB * E * 4 + TB * Lp * 2)                      # x / out tiles, double-buffered
        + 2 * ((E * Hp + Hp * Lp) * 2 + (Hp + Lp) * 4)      # weights + biases, double-buffered
        + TB * Hp * 4 + TB * Lp * 4 + TB * E * 2            # h, y, bf16(x) intermediates
    )
    # Cap at 48 MiB: safe on v7x's 64 MiB physical VMEM (and on v5e/v6e's 128 MiB).
    vmem_limit = int(min(48 * 2**20, max(16 * 2**20, 2 * vmem_need)))

    flops = 2 * Bo * (E * Hp + Hp * Lp)
    bytes_accessed = int(B * E * 4 + (E * Hp + Hp * Lp) * 2
                         + (Hp + Lp) * 4 + Bo * Lp * 2)
    transcendentals = Bo * Lp if multilabel else 0

    kernel = functools.partial(_mlp_kernel, multilabel=multilabel)

    out = pl.pallas_call(
        kernel,
        out_shape=jax.ShapeDtypeStruct((Bo, Lp), jnp.bfloat16),  # bf16 halves write traffic
        grid=(num_tiles,),
        in_specs=[
            pl.BlockSpec((TB, E), lambda i: (i, 0)),   # x: unpadded, tiled over batch
            pl.BlockSpec((E, Hp), lambda i: (0, 0)),   # W1: VMEM-resident
            pl.BlockSpec((1, Hp), lambda i: (0, 0)),   # b1: VMEM-resident
            pl.BlockSpec((Hp, Lp), lambda i: (0, 0)),  # W2: VMEM-resident
            pl.BlockSpec((1, Lp), lambda i: (0, 0)),   # b2: VMEM-resident
        ],
        out_specs=pl.BlockSpec((TB, Lp), lambda i: (i, 0)),
        compiler_params=pltpu.CompilerParams(
            dimension_semantics=("parallel",),          # batch tiles are independent
            vmem_limit_bytes=vmem_limit,
        ),
        cost_estimate=pl.CostEstimate(
            flops=flops,
            transcendentals=transcendentals,
            bytes_accessed=bytes_accessed,
        ),
    )(x, w1_p, b1_p, w2_p, b2_p)

    # Slice off batch/label padding and upcast to f32 for the caller.  This is
    # fused inside this jit and touches only B x L elements, not the padded slab.
    return out[:B, :label_dim].astype(jnp.float32)


def mlp_classifier_forward(doc_embedding, params, *, multilabel=False, batch_tile=512):
    """Run the fused MLP classifier kernel.

    doc_embedding: [E] or [B, E] float array (list of reals also accepted)
    params: dict from prepare_params()
    """
    x = jnp.asarray(doc_embedding, dtype=jnp.float32)
    squeeze = x.ndim == 1
    if squeeze:
        x = x[None, :]
    out = _forward(x, params["w1"], params["b1"], params["w2"], params["b2"],
                   multilabel=multilabel, label_dim=params["label_dim"],
                   batch_tile=batch_tile)
    return out[0] if squeeze else out


def init_params(key, embedding_dim, hidden_dim, label_dim):
    """Deterministic init mimicking nn.Linear's U(-1/sqrt(fan_in), 1/sqrt(fan_in))."""
    k1, k2, k3, k4 = jax.random.split(key, 4)
    bound1 = 1.0 / jnp.sqrt(embedding_dim)
    bound2 = 1.0 / jnp.sqrt(hidden_dim)
    # stored pre-transposed: [in, out]
    w1 = jax.random.uniform(k1, (embedding_dim, hidden_dim), jnp.float32, -bound1, bound1)
    b1 = jax.random.uniform(k2, (hidden_dim,), jnp.float32, -bound1, bound1)
    w2 = jax.random.uniform(k3, (hidden_dim, label_dim), jnp.float32, -bound2, bound2)
    b2 = jax.random.uniform(k4, (label_dim,), jnp.float32, -bound2, bound2)
    return w1, b1, w2, b2


if __name__ == "__main__":
    embedding_dim = 32
    hidden_dim = 32
    label_dim = 8
    batch = 2  # also exercise the 1-D single-doc path below

    key = jax.random.PRNGKey(0)
    kx, kp = jax.random.split(key)
    w1, b1, w2, b2 = init_params(kp, embedding_dim, hidden_dim, label_dim)
    params = prepare_params(w1, b1, w2, b2)   # pad/cast weights once, not per call

    # batched documents [B, E]
    x = jax.random.normal(kx, (batch, embedding_dim), jnp.float32)
    out = mlp_classifier_forward(x, params, multilabel=False)
    out = jax.block_until_ready(out)

    # single document embedding [E] (matches original forward's list-of-floats input)
    x1 = x[0]
    out1 = mlp_classifier_forward(x1, params, multilabel=True)
    out1 = jax.block_until_ready(out1)

    # reference check in plain JAX (emulate the kernel's bf16 matmul operands)
    def _bf(a):
        return a.astype(jnp.bfloat16).astype(jnp.float32)

    h_ref = jnp.maximum(_bf(x) @ _bf(w1) + b1, 0.0)
    ref = _bf(h_ref) @ _bf(w2) + b2

    assert out.shape == (batch, label_dim)
    assert out1.shape == (label_dim,)
    assert jnp.allclose(out, ref, atol=2e-2), "mismatch vs reference"
    assert jnp.allclose(out1, jax.nn.sigmoid(ref[0]), atol=2e-2), "multilabel mismatch"

    print("KERNEL_OK")
</pallas_src>

<mosaic_0001>
module attributes {stable_mosaic.version = 11 : i64} {
  func.func @_mlp_kernel(%arg0: i32, %arg1: memref<16x32xf32, #tpu.memory_space<vmem>>, %arg2: memref<32x128xbf16, #tpu.memory_space<vmem>>, %arg3: memref<1x128xf32, #tpu.memory_space<vmem>>, %arg4: memref<128x128xbf16, #tpu.memory_space<vmem>>, %arg5: memref<1x128xf32, #tpu.memory_space<vmem>>, %arg6: memref<16x128xbf16, #tpu.memory_space<vmem>>) attributes {dimension_semantics = [#tpu.dimension_semantics<parallel>], iteration_bounds = array<i64: 1>, scalar_prefetch = 0 : i64, scratch_operands = 0 : i64, tpu.core_type = #tpu.core_type<tc>, window_params = [{transform_indices = @transform_0, window_bounds = array<i64: 16, 32>}, {pipeline_mode = #tpu.pipeline_mode<synchronous>, transform_indices = @transform_1, window_bounds = array<i64: 32, 128>}, {pipeline_mode = #tpu.pipeline_mode<synchronous>, transform_indices = @transform_2, window_bounds = array<i64: 1, 128>}, {pipeline_mode = #tpu.pipeline_mode<synchronous>, transform_indices = @transform_3, window_bounds = array<i64: 128, 128>}, {pipeline_mode = #tpu.pipeline_mode<synchronous>, transform_indices = @transform_4, window_bounds = array<i64: 1, 128>}, {transform_indices = @transform_5, window_bounds = array<i64: 16, 128>}]} {
    %c0 = arith.constant 0 : index
    %c0_0 = arith.constant 0 : index
    %0 = vector.load %arg1[%c0, %c0_0] : memref<16x32xf32, #tpu.memory_space<vmem>>, vector<16x32xf32>
    %1 = arith.truncf %0 : vector<16x32xf32> to vector<16x32xbf16>
    %c0_1 = arith.constant 0 : index
    %c0_2 = arith.constant 0 : index
    %2 = vector.load %arg2[%c0_1, %c0_2] : memref<32x128xbf16, #tpu.memory_space<vmem>>, vector<32x128xbf16>
    %cst = arith.constant dense<0.000000e+00> : vector<16x128xf32>
    %3 = tpu.matmul %1, %2, %cst {dimension_numbers = #tpu.dot_dimension_numbers<[1], [0], [0], [1], [0, 0, 1, 1], [], []>} : vector<16x32xbf16>, vector<32x128xbf16>, vector<16x128xf32> -> vector<16x128xf32>
    %c0_3 = arith.constant 0 : index
    %c0_4 = arith.constant 0 : index
    %4 = vector.load %arg3[%c0_3, %c0_4] : memref<1x128xf32, #tpu.memory_space<vmem>>, vector<1x128xf32>
    %5 = vector.broadcast %4 : vector<1x128xf32> to vector<16x128xf32>
    %6 = arith.addf %3, %5 : vector<16x128xf32>
    %cst_5 = arith.constant 0.000000e+00 : f32
    %7 = vector.broadcast %cst_5 : f32 to vector<16x128xf32>
    %8 = arith.maximumf %6, %7 : vector<16x128xf32>
    %9 = arith.truncf %8 : vector<16x128xf32> to vector<16x128xbf16>
    %c0_6 = arith.constant 0 : index
    %c0_7 = arith.constant 0 : index
    %10 = vector.load %arg4[%c0_6, %c0_7] : memref<128x128xbf16, #tpu.memory_space<vmem>>, vector<128x128xbf16>
    %cst_8 = arith.constant dense<0.000000e+00> : vector<16x128xf32>
    %11 = tpu.matmul %9, %10, %cst_8 {dimension_numbers = #tpu.dot_dimension_numbers<[1], [0], [0], [1], [0, 0, 1, 1], [], []>} : vector<16x128xbf16>, vector<128x128xbf16>, vector<16x128xf32> -> vector<16x128xf32>
    %c0_9 = arith.constant 0 : index
    %c0_10 = arith.constant 0 : index
    %12 = vector.load %arg5[%c0_9, %c0_10] : memref<1x128xf32, #tpu.memory_space<vmem>>, vector<1x128xf32>
    %13 = vector.broadcast %12 : vector<1x128xf32> to vector<16x128xf32>
    %14 = arith.addf %11, %13 : vector<16x128xf32>
    %15 = arith.truncf %14 : vector<16x128xf32> to vector<16x128xbf16>
    %c0_11 = arith.constant 0 : index
    %c0_12 = arith.constant 0 : index
    %16 = vector.load %arg6[%c0_11, %c0_12] : memref<16x128xbf16, #tpu.memory_space<vmem>>, vector<16x128xbf16>
    tpu.vector_store %arg6[%c0_11, %c0_12], %15 {strides = array<i32>} : memref<16x128xbf16, #tpu.memory_space<vmem>>, vector<16x128xbf16>,
    return
  }
  func.func @transform_0(%arg0: i32) -> (i32, i32) {
    %c0_i32 = arith.constant 0 : i32
    %c0_i32_0 = arith.constant 0 : i32
    return %arg0, %c0_i32 : i32, i32
  }
  func.func @transform_1(%arg0: i32) -> (i32, i32) {
    %c0_i32 = arith.constant 0 : i32
    %c0_i32_0 = arith.constant 0 : i32
    %c0_i32_1 = arith.constant 0 : i32
    return %c0_i32, %c0_i32_0 : i32, i32
  }
  func.func @transform_2(%arg0: i32) -> (i32, i32) {
    %c0_i32 = arith.constant 0 : i32
    %c0_i32_0 = arith.constant 0 : i32
    %c0_i32_1 = arith.constant 0 : i32
    return %c0_i32, %c0_i32_0 : i32, i32
  }
  func.func @transform_3(%arg0: i32) -> (i32, i32) {
    %c0_i32 = arith.constant 0 : i32
    %c0_i32_0 = arith.constant 0 : i32
    %c0_i32_1 = arith.constant 0 : i32
    return %c0_i32, %c0_i32_0 : i32, i32
  }
  func.func @transform_4(%arg0: i32) -> (i32, i32) {
    %c0_i32 = arith.constant 0 : i32
    %c0_i32_0 = arith.constant 0 : i32
    %c0_i32_1 = arith.constant 0 : i32
    return %c0_i32, %c0_i32_0 : i32, i32
  }
  func.func @transform_5(%arg0: i32) -> (i32, i32) {
    %c0_i32 = arith.constant 0 : i32
    %c0_i32_0 = arith.constant 0 : i32
    return %arg0, %c0_i32 : i32, i32
  }
}

</mosaic_0001>

<llo_original>
// kernel: _forward.1
$region0: #{_forward.1}
  #allocation0 [shape = 'u32[]', space=smem, size = 0x4, offset = 0x4, fixed_abs, tag = 'smem constant byte address 0x4 - core index']
  #allocation1 [shape = 'u32[72,128]{1,0:T(1,128)}', space=vmem, size = 0x9000, scoped, tag = 'internal scratch']
  %s0 = inlined_call_operand.hbm [shape: f32[2,32], index: 0, kind: input, shape index: {}]
  %s1 = inlined_call_operand.hbm [shape: bf16[32,128], index: 1, kind: input, shape index: {}]
  %s2 = inlined_call_operand.vmem [shape: f32[1,128], index: 2, kind: input, shape index: {}]
  %s3 = inlined_call_operand.hbm [shape: bf16[128,128], index: 3, kind: input, shape index: {}]
  %s4 = inlined_call_operand.vmem [shape: f32[1,128], index: 4, kind: input, shape index: {}]
  %s5 = inlined_call_operand.vmem [shape: bf16[16,128], index: 5, kind: output, shape index: {}]
  %s6 = sld [smem:[#allocation0]]
  $region42: #{_forward.1} parent=0
    _
  %s8 = ssub.s32 1, %s6
  %s9 = scalar_select 0, %s8, %s6
  $region1: #{_forward.1} parent=0
    #allocation2 [shape = 'u8[8192]{0}', space=vmem, size = 0x2000, scoped, tag = 'input window, operand 0, single buffered']
    #allocation3 [shape = 's32[1]{0}', space=sflag, size = 0x4, scoped, tag = 'scoped memory for _forward.1']
    #allocation4 [shape = 'u8[8192]{0}', space=vmem, size = 0x2000, scoped, tag = 'input window, operand 1, single buffered']
    #allocation5 [shape = 's32[1]{0}', space=sflag, size = 0x4, scoped, tag = 'scoped memory for _forward.1']
    #allocation6 [shape = 'u8[32768]{0}', space=vmem, size = 0x8000, scoped, tag = 'input window, operand 3, single buffered']
    %10 = vsyncpa [#allocation3], 0
    %11 = vsyncpa [#allocation5], 0
    // Predicated region
    $region2: #{_forward.1} parent=1 // pred_check
      _
    $region3: #{_forward.1} parent=1 // pred_check_branch
      %13 = sbr.rel (0) target = $region5
    $region4: #{_forward.1} parent=1 // pred_region
      %15 = vsyncadd [#allocation3], 224
      %s16 = sshll.u32 %s0, 4
      %s17 = int_to_ptr.hbm [resolvable:$true] %s16
      %s18 = sshll.u32 [#allocation2], 4
      %s19 = int_to_ptr.vmem [resolvable:$true] %s18
      %24 = dma.hbm_to_vmem [thread:$0]  %s17, 32, %s19, [#allocation3], 32, 32, 2
    $region5: #{_forward.1} parent=1 // pred_fallthru
      _
    // Predicated region
    $region6: #{_forward.1} parent=1 // pred_check
      _
    $region7: #{_forward.1} parent=1 // pred_check_branch
      %26 = sbr.rel (0) target = $region9
    $region8: #{_forward.1} parent=1 // pred_region
      %28 = vsyncadd [#allocation5], 0
      %s29 = sshll.u32 %s1, 4
      %s30 = int_to_ptr.hbm [resolvable:$true] %s29
      %s31 = sshll.u32 [#allocation4], 4
      %s32 = int_to_ptr.vmem [resolvable:$true] %s31
      %37 = dma.hbm_to_vmem [thread:$0]  %s30, 256, %s32, [#allocation5], 64, 64, 4
    $region9: #{_forward.1} parent=1 // pred_fallthru
      _
    // Predicated region
    $region10: #{_forward.1} parent=1 // pred_check
      _
    $region11: #{_forward.1} parent=1 // pred_check_branch
      %39 = sbr.rel (0) target = $region13
    $region12: #{_forward.1} parent=1 // pred_region
      _
    $region13: #{_forward.1} parent=1 // pred_fallthru
      _
    // Predicated region
    $region14: #{_forward.1} parent=1 // pred_check
      _
    $region15: #{_forward.1} parent=1 // pred_check_branch
      %41 = sbr.rel (0) target = $region17
    $region16: #{_forward.1} parent=1 // pred_region
      %43 = vsyncadd [#allocation5], 0
      %s44 = sshll.u32 %s3, 4
      %s45 = int_to_ptr.hbm [resolvable:$true] %s44
      %s46 = sshll.u32 [#allocation6], 4
      %s47 = int_to_ptr.vmem [resolvable:$true] %s46
      %52 = dma.hbm_to_vmem [thread:$0]  %s45, 1024, %s47, [#allocation5], 64, 64, 4
    $region17: #{_forward.1} parent=1 // pred_fallthru
      _
    // Predicated region
    $region18: #{_forward.1} parent=1 // pred_check
      _
    $region19: #{_forward.1} parent=1 // pred_check_branch
      %54 = sbr.rel (0) target = $region21
    $region20: #{_forward.1} parent=1 // pred_region
      _
    $region21: #{_forward.1} parent=1 // pred_fallthru
      _
    // Predicated region
    $region22: #{_forward.1} parent=1 // pred_check
      _
    $region23: #{_forward.1} parent=1 // pred_check_branch
      %56 = sbr.rel (0) target = $region25
    $region24: #{_forward.1} parent=1 // pred_region
      %58 = dma.done [#allocation3], 256
    $region25: #{_forward.1} parent=1 // pred_fallthru
      _
    // Predicated region
    $region26: #{_forward.1} parent=1 // pred_check
      _
    $region27: #{_forward.1} parent=1 // pred_check_branch
      %60 = sbr.rel (0) target = $region29
    $region28: #{_forward.1} parent=1 // pred_region
      %62 = dma.done [#allocation5], 256
    $region29: #{_forward.1} parent=1 // pred_fallthru
      _
    // Predicated region
    $region30: #{_forward.1} parent=1 // pred_check
      _
    $region31: #{_forward.1} parent=1 // pred_check_branch
      %64 = sbr.rel (0) target = $region33
    $region32: #{_forward.1} parent=1 // pred_region
      %66 = dma.done [#allocation5], 1024
    $region33: #{_forward.1} parent=1 // pred_fallthru
      _
    %v68 = vld [vmem:[#allocation2] sm:$0xff]
    %v69 = vld [vmem:[#allocation2 + $0x8] sm:$0xff]
    %v70 = vpack.c.bf16 %v69, %v68
    %v71 = vld [vmem:[#allocation4] sm:$0xf]
    %v72 = vld [vmem:[#allocation4 + $0x4] sm:$0xf]
    %v73 = vld [vmem:[#allocation4 + $0x8] sm:$0xf]
    %v74 = vld [vmem:[#allocation4 + $0xc] sm:$0xf]
    %v75 = vld [vmem:[%s2] sm:$0x1]
    %v77 = vperm.slane %v75, 0
    %v83 = vunpack.c.l.b16 %v71
    %v84 = vunpack.c.l.b16 %v72
    %v85 = vunpack.c.l.b16 %v73
    %v86 = vunpack.c.l.b16 %v74
    %v87 = vpack.c.b16 %v84, %v83
    %v88 = vpack.c.b16 %v86, %v85
    %vm91 = vcmask 261120
    %v93 = vsel %vm91, %v70, 0
    %95 = vmatpush.bf16.msra.mxu0 0
    %96 = vmatpush.bf16.msra.mxu0 0
    %97 = vmatpush.bf16.msra.mxu0 0
    %98 = vmatpush.bf16.msra.mxu0 0
    %99 = vmatpush.bf16.msra.mxu0 0
    %100 = vmatpush.bf16.msra.mxu0 0
    %101 = vmatpush.bf16.msra.mxu0 %v88
    %102 = vmatpush.bf16.msra.mxu0 %v87
    %103 = vmatmul.bf16.gmra.mxu0 %v93
    %v104 = vpop.f32.mrf.mxu0
    %v105 = vadd.f32 %v77, %v104
    %v106 = vpop.f32.mrf.mxu0
    %v107 = vadd.f32 %v77, %v106
    %108 = vdwg.mxu0
    %v109 = vmax.f32 %v105, 0.0
    %v110 = vmax.f32 %v107, 0.0
    %v111 = vpack.c.bf16 %v110, %v109
    %v112 = vld [vmem:[#allocation6] sm:$0xf]
    %v113 = vld [vmem:[#allocation6 + $0x4] sm:$0xf]
    %v114 = vld [vmem:[#allocation6 + $0x8] sm:$0xf]
    %v115 = vld [vmem:[#allocation6 + $0xc] sm:$0xf]
    %v116 = vld [vmem:[#allocation6 + $0x10] sm:$0xf]
    %v117 = vld [vmem:[#allocation6 + $0x14] sm:$0xf]
    %v118 = vld [vmem:[#allocation6 + $0x18] sm:$0xf]
    %v119 = vld [vmem:[#allocation6 + $0x1c] sm:$0xf]
    %v120 = vld [vmem:[#allocation6 + $0x20] sm:$0xf]
    %v121 = vld [vmem:[#allocation6 + $0x24] sm:$0xf]
    %v122 = vld [vmem:[#allocation6 + $0x28] sm:$0xf]
    %v123 = vld [vmem:[#allocation6 + $0x2c] sm:$0xf]
    %v124 = vld [vmem:[#allocation6 + $0x30] sm:$0xf]
    %v125 = vld [vmem:[#allocation6 + $0x34] sm:$0xf]
    %v126 = vld [vmem:[#allocation6 + $0x38] sm:$0xf]
    %v127 = vld [vmem:[#allocation6 + $0x3c] sm:$0xf]
    %v128 = vld [vmem:[%s4] sm:$0x1]
    %v130 = vperm.slane %v128, 0
    %v148 = vunpack.c.l.b16 %v112
    %v149 = vunpack.c.l.b16 %v113
    %v150 = vunpack.c.l.b16 %v114
    %v151 = vunpack.c.l.b16 %v115
    %v152 = vunpack.c.l.b16 %v116
    %v153 = vunpack.c.l.b16 %v117
    %v154 = vunpack.c.l.b16 %v118
    %v155 = vunpack.c.l.b16 %v119
    %v156 = vunpack.c.l.b16 %v120
    %v157 = vunpack.c.l.b16 %v121
    %v158 = vunpack.c.l.b16 %v122
    %v159 = vunpack.c.l.b16 %v123
    %v160 = vunpack.c.l.b16 %v124
    %v161 = vunpack.c.l.b16 %v125
    %v162 = vunpack.c.l.b16 %v126
    %v163 = vunpack.c.l.b16 %v127
    %v164 = vpack.c.b16 %v149, %v148
    %v165 = vpack.c.b16 %v151, %v150
    %v166 = vpack.c.b16 %v153, %v152
    %v167 = vpack.c.b16 %v155, %v154
    %v168 = vpack.c.b16 %v157, %v156
    %v169 = vpack.c.b16 %v159, %v158
    %v170 = vpack.c.b16 %v161, %v160
    %v171 = vpack.c.b16 %v163, %v162
    %180 = vmatpush.bf16.msra.mxu0 %v171
    %181 = vmatpush.bf16.msra.mxu0 %v170
    %182 = vmatpush.bf16.msra.mxu0 %v169
    %183 = vmatpush.bf16.msra.mxu0 %v168
    %184 = vmatpush.bf16.msra.mxu0 %v167
    %185 = vmatpush.bf16.msra.mxu0 %v166
    %186 = vmatpush.bf16.msra.mxu0 %v165
    %187 = vmatpush.bf16.msra.mxu0 %v164
    %188 = vmatmul.bf16.gmra.mxu0 %v111
    %v189 = vpop.f32.mrf.mxu0
    %v190 = vadd.f32 %v130, %v189
    %v191 = vpop.f32.mrf.mxu0
    %v192 = vadd.f32 %v130, %v191
    %193 = vdwg.mxu0
    %v194 = vpack.c.bf16 %v190, %v190
    %v195 = vpack.c.bf16 %v192, %v192
    %196 = vst [vmem:[%s5] sm:$0xf] %v194
    %197 = vst [vmem:[%s5 + $0x4] sm:$0xf] %v195
    // Predicated region
    $region34: #{_forward.1} parent=1 // pred_check
      _
    $region35: #{_forward.1} parent=1 // pred_check_branch
      %199 = sbr.rel (0) target = $region37
    $region36: #{_forward.1} parent=1 // pred_region
      _
    $region37: #{_forward.1} parent=1 // pred_fallthru
      _
    // Predicated region
    $region38: #{_forward.1} parent=1 // pred_check
      _
    $region39: #{_forward.1} parent=1 // pred_check_branch
      %201 = sbr.rel (0) target = $region41
    $region40: #{_forward.1} parent=1 // pred_region
      _
    $region41: #{_forward.1} parent=1 // pred_fallthru
      _
    %202 = vsyncpa [#allocation3], 1
    %203 = vsyncpa [#allocation5], 1

</llo_original>
